<compile_context>
chip_gen: v7x
topology: tpu7x:2x2x1
jax: 0.10.0
libtpu: 0.0.40
codegen_flags: <defaults>
</compile_context>

<pallas_src>
import functools

import jax
import jax.numpy as jnp
from jax.experimental import pallas as pl
from jax.experimental.pallas import tpu as pltpu

LN_EPS = 1e-5  # nn.LayerNorm default


def _vmem_capacity_bytes():
    """Physical per-core VMEM, with a conservative fallback (v7x = 64 MiB)."""
    try:
        info = pltpu.get_tpu_info()
        cap = getattr(info, "vmem_capacity_bytes", None)
        if cap:
            return int(cap)
    except Exception:
        pass
    return 64 << 20


_VMEM_CAP = _vmem_capacity_bytes()
# Leave headroom for Mosaic internal scratch/semaphores: never request the
# entire physical VMEM.
_VMEM_LIMIT_CAP = min(_VMEM_CAP - (12 << 20), 104 << 20)
# Weight-block budget for hidden-axis tiling (2 weights x 2 buffers resident).
_WEIGHT_BLOCK_TARGET = (16 << 20) if _VMEM_CAP >= (96 << 20) else (4 << 20)


def _res_block_kernel(x_ref, gamma_ref, beta_ref, w1_ref, b1_ref, w2_ref,
                      b2_ref, o_ref, xn_mm_ref, acc_ref):
    """Grid = (row_blocks, hidden_blocks).  Hidden axis is a reduction."""
    k = pl.program_id(1)
    nk = pl.num_programs(1)

    # ---- LayerNorm (once per row block, at the first hidden step) ---------
    @pl.when(k == 0)
    def _init():
        x = x_ref[...].astype(jnp.float32)                     # (TM, C)
        mean = jnp.mean(x, axis=-1, keepdims=True)
        var = jnp.mean((x - mean) * (x - mean), axis=-1, keepdims=True)
        xn = (x - mean) * jax.lax.rsqrt(var + LN_EPS)
        xn = (xn * gamma_ref[...].astype(jnp.float32)
              + beta_ref[...].astype(jnp.float32))
        # Residual + output bias folded into the f32 accumulator; the residual
        # path therefore stays f32 end-to-end.
        acc_ref[...] = xn + b2_ref[...].astype(jnp.float32)
        # One-time cast of the MXU LHS to the matmul dtype.
        xn_mm_ref[...] = xn.astype(xn_mm_ref.dtype)

    # ---- MLP over this hidden block: Linear -> GELU -> Linear (partial) ---
    h = jnp.dot(xn_mm_ref[...], w1_ref[...], preferred_element_type=jnp.float32)
    h = h + b1_ref[...].astype(jnp.float32)                    # (TM, TH)
    # GELU.  PyTorch nn.GELU() defaults to the exact erf form; we use the tanh
    # approximation since erf lowering inside Mosaic is not guaranteed.
    # TODO(synk): switch to exact erf-based GELU once lax.erf lowers in Mosaic.
    c0 = jnp.float32(0.7978845608028654)                       # sqrt(2/pi)
    h = 0.5 * h * (1.0 + jnp.tanh(c0 * (h + 0.044715 * (h * h * h))))
    acc_ref[...] += jnp.dot(h.astype(w2_ref.dtype), w2_ref[...],
                            preferred_element_type=jnp.float32)

    # ---- store (last hidden step): residual & bias already in acc ---------
    @pl.when(k == nk - 1)
    def _finish():
        o_ref[...] = acc_ref[...].astype(o_ref.dtype)


def _pick_hidden_tile(channels, w_itemsize, target_bytes):
    """Largest hidden tile (power-of-two fraction of C, 256/128-aligned) whose
    (C, tH) weight block stays under `target_bytes`; falls back to full C."""
    if channels * channels * w_itemsize <= target_bytes or channels % 128 != 0:
        return channels
    align = 256 if channels % 256 == 0 else 128
    th = channels
    while (channels * th * w_itemsize > target_bytes
           and th % 2 == 0 and (th // 2) % align == 0):
        th //= 2
    return th


def prepare_mlp_weights(w1_t, w2_t, matmul_dtype=jnp.bfloat16):
    """Cast the (C, C) MLP weights to the matmul dtype ONCE, outside the
    per-call wrapper, so no HBM convert is emitted on every forward."""
    return w1_t.astype(matmul_dtype), w2_t.astype(matmul_dtype)


@functools.partial(jax.jit,
                   static_argnames=("block_rows", "hidden_block", "matmul_dtype"))
def simple_res_block(x, gamma, beta, w1_t, b1, w2_t, b2, *,
                     block_rows=512, hidden_block=None,
                     matmul_dtype=jnp.bfloat16):
    """x: (B, S, C).  w1_t / w2_t are (C, C) = PyTorch nn.Linear weight,
    transposed (in, out) — ideally already cast via prepare_mlp_weights."""
    B, S, C = x.shape
    N = B * S
    x2 = x.reshape(N, C)

    # Row tile: full array if small, else 256-aligned (8-aligned fallback) to
    # keep the 256^2 MXUs full and output stores unmasked.
    tm = min(block_rows, N)
    if tm < N:
        if tm >= 256:
            tm = (tm // 256) * 256
        else:
            tm = max(8, (tm // 8) * 8)
    # NOTE(megacore): the row axis is "parallel" and split across TCs; with
    # very small N keep at least 2 row blocks worth of work when N > tm.

    w_itemsize = jnp.dtype(matmul_dtype).itemsize
    if hidden_block is None:
        tH = _pick_hidden_tile(C, w_itemsize, _WEIGHT_BLOCK_TARGET)
    else:
        tH = min(hidden_block, C)
    if C % tH != 0:          # hidden blocks must tile C exactly (no padded cols)
        tH = C
    nh = C // tH

    # Matmul operands in bf16 (f32 MXU accumulation); affine/bias kept in f32.
    # These casts are no-ops when the caller already pre-cast the weights.
    w1m = w1_t if w1_t.dtype == matmul_dtype else w1_t.astype(matmul_dtype)
    w2m = w2_t if w2_t.dtype == matmul_dtype else w2_t.astype(matmul_dtype)
    gamma2 = gamma.reshape(1, C).astype(jnp.float32)
    beta2 = beta.reshape(1, C).astype(jnp.float32)
    b1_2 = b1.reshape(1, C).astype(jnp.float32)
    b2_2 = b2.reshape(1, C).astype(jnp.float32)

    row_blocks = pl.cdiv(N, tm)
    grid = (row_blocks, nh)

    x_item = x.dtype.itemsize
    out_item = x.dtype.itemsize
    mm_item = jnp.dtype(matmul_dtype).itemsize
    vmem_est = int(1.25 * (
        2 * tm * C * (x_item + out_item)       # double-buffered x / out tiles
        + 4 * C * tH * w_itemsize              # double-buffered W1 / W2 blocks
        + tm * C * (4 + mm_item)               # f32 acc + bf16 xn scratch
        + 16 * C * 4))                         # gamma/beta/biases (buffered)
    vmem_limit = int(min(max(vmem_est, 32 << 20), _VMEM_LIMIT_CAP))

    cost = pl.CostEstimate(
        flops=4 * N * C * C,                   # two (N,C)x(C,C) matmuls
        transcendentals=N * C,                 # tanh in GELU
        bytes_accessed=(N * C * (x_item + out_item)
                        + row_blocks * 2 * C * C * w_itemsize  # weight re-streams
                        + 6 * C * 4))

    out = pl.pallas_call(
        _res_block_kernel,
        out_shape=jax.ShapeDtypeStruct((N, C), x.dtype),
        grid_spec=pltpu.PrefetchScalarGridSpec(
            num_scalar_prefetch=0,
            grid=grid,
            in_specs=[
                pl.BlockSpec((tm, C), lambda i, k: (i, 0)),   # x row tile
                pl.BlockSpec((1, C), lambda i, k: (0, 0)),    # gamma
                pl.BlockSpec((1, C), lambda i, k: (0, 0)),    # beta
                pl.BlockSpec((C, tH), lambda i, k: (0, k)),   # W1^T hidden block
                pl.BlockSpec((1, tH), lambda i, k: (0, k)),   # b1 hidden block
                pl.BlockSpec((tH, C), lambda i, k: (k, 0)),   # W2^T hidden block
                pl.BlockSpec((1, C), lambda i, k: (0, 0)),    # b2
            ],
            out_specs=pl.BlockSpec((tm, C), lambda i, k: (i, 0)),
            scratch_shapes=[
                pltpu.VMEM((tm, C), matmul_dtype),  # xn in matmul dtype (MXU LHS)
                pltpu.VMEM((tm, C), jnp.float32),   # accumulator (incl. residual)
            ],
        ),
        compiler_params=pltpu.CompilerParams(
            dimension_semantics=("parallel", "arbitrary"),
            vmem_limit_bytes=vmem_limit),
        cost_estimate=cost,
    )(x2, gamma2, beta2, w1m, b1_2, w2m, b2_2)

    return out.reshape(B, S, C)


def _init_params(key, channels, dtype=jnp.float32):
    """Deterministic synthetic parameters matching SimpleResBlock(channels)."""
    k1, k2, k3, k4 = jax.random.split(key, 4)
    bound = 1.0 / jnp.sqrt(channels)  # nn.Linear default init range
    gamma = jnp.ones((channels,), dtype)               # LayerNorm weight
    beta = jnp.zeros((channels,), dtype)               # LayerNorm bias
    # Stored already transposed: (in, out).
    w1_t = jax.random.uniform(k1, (channels, channels), dtype, -bound, bound)
    b1 = jax.random.uniform(k2, (channels,), dtype, -bound, bound)
    w2_t = jax.random.uniform(k3, (channels, channels), dtype, -bound, bound)
    b2 = jax.random.uniform(k4, (channels,), dtype, -bound, bound)
    return gamma, beta, w1_t, b1, w2_t, b2


def _reference_matched(x, gamma, beta, w1_t, b1, w2_t, b2,
                       matmul_dtype=jnp.bfloat16):
    """Plain-JAX reference mirroring the kernel's numerics (bf16 matmuls,
    f32 LayerNorm / residual / accumulation)."""
    B, S, C = x.shape
    xf = x.reshape(-1, C).astype(jnp.float32)
    mean = jnp.mean(xf, axis=-1, keepdims=True)
    var = jnp.mean((xf - mean) ** 2, axis=-1, keepdims=True)
    xn = (xf - mean) * jax.lax.rsqrt(var + LN_EPS)
    xn = xn * gamma.astype(jnp.float32) + beta.astype(jnp.float32)
    h = jnp.dot(xn.astype(matmul_dtype), w1_t.astype(matmul_dtype),
                preferred_element_type=jnp.float32) + b1.astype(jnp.float32)
    c0 = jnp.float32(0.7978845608028654)
    h = 0.5 * h * (1.0 + jnp.tanh(c0 * (h + 0.044715 * h * h * h)))
    y = jnp.dot(h.astype(matmul_dtype), w2_t.astype(matmul_dtype),
                preferred_element_type=jnp.float32) + b2.astype(jnp.float32)
    return (xn + y).astype(x.dtype).reshape(B, S, C)


def _reference_f32(x, gamma, beta, w1_t, b1, w2_t, b2):
    """Full f32 reference of the module's forward pass (tanh GELU)."""
    xf = x.astype(jnp.float32)
    mean = jnp.mean(xf, axis=-1, keepdims=True)
    var = jnp.mean((xf - mean) ** 2, axis=-1, keepdims=True)
    xn = (xf - mean) * jax.lax.rsqrt(var + LN_EPS) * gamma + beta
    h = xn @ w1_t + b1
    h = jax.nn.gelu(h, approximate=True)
    y = h @ w2_t + b2
    return (xn + y).astype(x.dtype)


if __name__ == "__main__":
    key = jax.random.PRNGKey(0)

    # --- small smoke test (single grid step) --------------------------------
    B, S, C = 2, 8, 32
    kx, kp, kx2, kp2 = jax.random.split(key, 4)
    x = jax.random.normal(kx, (B, S, C), jnp.float32)
    gamma, beta, w1_t, b1, w2_t, b2 = _init_params(kp, C)
    w1_bf, w2_bf = prepare_mlp_weights(w1_t, w2_t)          # cast once, outside jit

    out = simple_res_block(x, gamma, beta, w1_bf, b1, w2_bf, b2)
    out = jax.block_until_ready(out)
    assert out.shape == (B, S, C)
    assert jnp.max(jnp.abs(
        out - _reference_matched(x, gamma, beta, w1_bf, b1, w2_bf, b2))) < 2e-3
    assert jnp.max(jnp.abs(
        out - _reference_f32(x, gamma, beta, w1_t, b1, w2_t, b2))) < 5e-2

    # --- multi-block test: exercises row tiling + hidden-axis accumulator ---
    B2, S2, C2 = 2, 64, 256
    x2 = jax.random.normal(kx2, (B2, S2, C2), jnp.float32)
    g2, be2, w1b, b1b, w2b, b2b = _init_params(kp2, C2)
    w1b_bf, w2b_bf = prepare_mlp_weights(w1b, w2b)
    out2 = simple_res_block(x2, g2, be2, w1b_bf, b1b, w2b_bf, b2b,
                            block_rows=64, hidden_block=128)
    out2 = jax.block_until_ready(out2)
    assert out2.shape == (B2, S2, C2)
    assert jnp.max(jnp.abs(
        out2 - _reference_matched(x2, g2, be2, w1b_bf, b1b, w2b_bf, b2b))) < 2e-3
    assert jnp.max(jnp.abs(
        out2 - _reference_f32(x2, g2, be2, w1b, b1b, w2b, b2b))) < 5e-2

    print("KERNEL_OK")
</pallas_src>

<mosaic_0001>
module attributes {stable_mosaic.version = 11 : i64} {
  func.func @_res_block_kernel(%arg0: i32, %arg1: i32, %arg2: memref<16x32xf32, #tpu.memory_space<vmem>>, %arg3: memref<1x32xf32, #tpu.memory_space<vmem>>, %arg4: memref<1x32xf32, #tpu.memory_space<vmem>>, %arg5: memref<32x32xbf16, #tpu.memory_space<vmem>>, %arg6: memref<1x32xf32, #tpu.memory_space<vmem>>, %arg7: memref<32x32xbf16, #tpu.memory_space<vmem>>, %arg8: memref<1x32xf32, #tpu.memory_space<vmem>>, %arg9: memref<16x32xf32, #tpu.memory_space<vmem>>, %arg10: memref<16x32xbf16, #tpu.memory_space<vmem>>, %arg11: memref<16x32xf32, #tpu.memory_space<vmem>>) attributes {dimension_semantics = [#tpu.dimension_semantics<parallel>, #tpu.dimension_semantics<arbitrary>], iteration_bounds = array<i64: 1, 1>, scalar_prefetch = 0 : i64, scratch_operands = 2 : i64, tpu.core_type = #tpu.core_type<tc>, window_params = [{transform_indices = @transform_0, window_bounds = array<i64: 16, 32>}, {pipeline_mode = #tpu.pipeline_mode<synchronous>, transform_indices = @transform_1, window_bounds = array<i64: 1, 32>}, {pipeline_mode = #tpu.pipeline_mode<synchronous>, transform_indices = @transform_2, window_bounds = array<i64: 1, 32>}, {transform_indices = @transform_3, window_bounds = array<i64: 32, 32>}, {transform_indices = @transform_4, window_bounds = array<i64: 1, 32>}, {transform_indices = @transform_5, window_bounds = array<i64: 32, 32>}, {pipeline_mode = #tpu.pipeline_mode<synchronous>, transform_indices = @transform_6, window_bounds = array<i64: 1, 32>}, {transform_indices = @transform_7, window_bounds = array<i64: 16, 32>}]} {
    %c0_i32 = arith.constant 0 : i32
    %0 = arith.cmpi eq, %arg1, %c0_i32 : i32
    %1 = arith.extui %0 : i1 to i32
    %c0_i32_0 = arith.constant 0 : i32
    %2 = arith.cmpi ne, %1, %c0_i32_0 : i32
    scf.if %2 {
      %c0_19 = arith.constant 0 : index
      %c0_20 = arith.constant 0 : index
      %31 = vector.load %arg2[%c0_19, %c0_20] : memref<16x32xf32, #tpu.memory_space<vmem>>, vector<16x32xf32>
      %cst_21 = arith.constant dense<0.000000e+00> : vector<16xf32>
      %32 = vector.multi_reduction <add>, %31, %cst_21 [1] : vector<16x32xf32> to vector<16xf32>
      %33 = vector.shape_cast %32 : vector<16xf32> to vector<16x1xf32>
      %cst_22 = arith.constant 3.200000e+01 : f32
      %34 = vector.broadcast %cst_22 : f32 to vector<16x1xf32>
      %35 = arith.divf %33, %34 : vector<16x1xf32>
      %36 = vector.broadcast %35 : vector<16x1xf32> to vector<16x32xf32>
      %37 = arith.subf %31, %36 : vector<16x32xf32>
      %38 = vector.broadcast %35 : vector<16x1xf32> to vector<16x32xf32>
      %39 = arith.subf %31, %38 : vector<16x32xf32>
      %40 = arith.mulf %37, %39 : vector<16x32xf32>
      %cst_23 = arith.constant dense<0.000000e+00> : vector<16xf32>
      %41 = vector.multi_reduction <add>, %40, %cst_23 [1] : vector<16x32xf32> to vector<16xf32>
      %42 = vector.shape_cast %41 : vector<16xf32> to vector<16x1xf32>
      %cst_24 = arith.constant 3.200000e+01 : f32
      %43 = vector.broadcast %cst_24 : f32 to vector<16x1xf32>
      %44 = arith.divf %42, %43 : vector<16x1xf32>
      %45 = vector.broadcast %35 : vector<16x1xf32> to vector<16x32xf32>
      %46 = arith.subf %31, %45 : vector<16x32xf32>
      %cst_25 = arith.constant 9.99999974E-6 : f32
      %47 = vector.broadcast %cst_25 : f32 to vector<16x1xf32>
      %48 = arith.addf %44, %47 : vector<16x1xf32>
      %49 = math.rsqrt %48 : vector<16x1xf32>
      %50 = vector.broadcast %49 : vector<16x1xf32> to vector<16x32xf32>
      %51 = arith.mulf %46, %50 : vector<16x32xf32>
      %c0_26 = arith.constant 0 : index
      %c0_27 = arith.constant 0 : index
      %52 = vector.load %arg3[%c0_26, %c0_27] : memref<1x32xf32, #tpu.memory_space<vmem>>, vector<1x32xf32>
      %53 = vector.broadcast %52 : vector<1x32xf32> to vector<16x32xf32>
      %54 = arith.mulf %51, %53 : vector<16x32xf32>
      %c0_28 = arith.constant 0 : index
      %c0_29 = arith.constant 0 : index
      %55 = vector.load %arg4[%c0_28, %c0_29] : memref<1x32xf32, #tpu.memory_space<vmem>>, vector<1x32xf32>
      %56 = vector.broadcast %55 : vector<1x32xf32> to vector<16x32xf32>
      %57 = arith.addf %54, %56 : vector<16x32xf32>
      %c0_30 = arith.constant 0 : index
      %c0_31 = arith.constant 0 : index
      %58 = vector.load %arg8[%c0_30, %c0_31] : memref<1x32xf32, #tpu.memory_space<vmem>>, vector<1x32xf32>
      %59 = vector.broadcast %58 : vector<1x32xf32> to vector<16x32xf32>
      %60 = arith.addf %57, %59 : vector<16x32xf32>
      %c0_32 = arith.constant 0 : index
      %c0_33 = arith.constant 0 : index
      %61 = vector.load %arg11[%c0_32, %c0_33] : memref<16x32xf32, #tpu.memory_space<vmem>>, vector<16x32xf32>
      tpu.vector_store %arg11[%c0_32, %c0_33], %60 {strides = array<i32>} : memref<16x32xf32, #tpu.memory_space<vmem>>, vector<16x32xf32>,
      %62 = arith.truncf %57 : vector<16x32xf32> to vector<16x32xbf16>
      %c0_34 = arith.constant 0 : index
      %c0_35 = arith.constant 0 : index
      %63 = vector.load %arg10[%c0_34, %c0_35] : memref<16x32xbf16, #tpu.memory_space<vmem>>, vector<16x32xbf16>
      tpu.vector_store %arg10[%c0_34, %c0_35], %62 {strides = array<i32>} : memref<16x32xbf16, #tpu.memory_space<vmem>>, vector<16x32xbf16>,
    } else {
    }
    %c0 = arith.constant 0 : index
    %c0_1 = arith.constant 0 : index
    %3 = vector.load %arg10[%c0, %c0_1] : memref<16x32xbf16, #tpu.memory_space<vmem>>, vector<16x32xbf16>
    %c0_2 = arith.constant 0 : index
    %c0_3 = arith.constant 0 : index
    %4 = vector.load %arg5[%c0_2, %c0_3] : memref<32x32xbf16, #tpu.memory_space<vmem>>, vector<32x32xbf16>
    %cst = arith.constant dense<0.000000e+00> : vector<16x32xf32>
    %5 = tpu.matmul %3, %4, %cst {dimension_numbers = #tpu.dot_dimension_numbers<[1], [0], [0], [1], [0, 0, 1, 1], [], []>} : vector<16x32xbf16>, vector<32x32xbf16>, vector<16x32xf32> -> vector<16x32xf32>
    %c0_4 = arith.constant 0 : index
    %c0_5 = arith.constant 0 : index
    %6 = vector.load %arg6[%c0_4, %c0_5] : memref<1x32xf32, #tpu.memory_space<vmem>>, vector<1x32xf32>
    %7 = vector.broadcast %6 : vector<1x32xf32> to vector<16x32xf32>
    %8 = arith.addf %5, %7 : vector<16x32xf32>
    %cst_6 = arith.constant 5.000000e-01 : f32
    %9 = vector.broadcast %cst_6 : f32 to vector<16x32xf32>
    %10 = arith.mulf %9, %8 : vector<16x32xf32>
    %11 = arith.mulf %8, %8 : vector<16x32xf32>
    %12 = arith.mulf %11, %8 : vector<16x32xf32>
    %cst_7 = arith.constant 4.471500e-02 : f32
    %13 = vector.broadcast %cst_7 : f32 to vector<16x32xf32>
    %14 = arith.mulf %13, %12 : vector<16x32xf32>
    %15 = arith.addf %8, %14 : vector<16x32xf32>
    %cst_8 = arith.constant 0.797884583 : f32
    %16 = vector.broadcast %cst_8 : f32 to vector<16x32xf32>
    %17 = arith.mulf %16, %15 : vector<16x32xf32>
    %18 = math.tanh %17 : vector<16x32xf32>
    %cst_9 = arith.constant 1.000000e+00 : f32
    %19 = vector.broadcast %cst_9 : f32 to vector<16x32xf32>
    %20 = arith.addf %19, %18 : vector<16x32xf32>
    %21 = arith.mulf %10, %20 : vector<16x32xf32>
    %c0_10 = arith.constant 0 : index
    %c0_11 = arith.constant 0 : index
    %22 = vector.load %arg11[%c0_10, %c0_11] : memref<16x32xf32, #tpu.memory_space<vmem>>, vector<16x32xf32>
    %23 = arith.truncf %21 : vector<16x32xf32> to vector<16x32xbf16>
    %c0_12 = arith.constant 0 : index
    %c0_13 = arith.constant 0 : index
    %24 = vector.load %arg7[%c0_12, %c0_13] : memref<32x32xbf16, #tpu.memory_space<vmem>>, vector<32x32xbf16>
    %cst_14 = arith.constant dense<0.000000e+00> : vector<16x32xf32>
    %25 = tpu.matmul %23, %24, %cst_14 {dimension_numbers = #tpu.dot_dimension_numbers<[1], [0], [0], [1], [0, 0, 1, 1], [], []>} : vector<16x32xbf16>, vector<32x32xbf16>, vector<16x32xf32> -> vector<16x32xf32>
    %26 = arith.addf %22, %25 : vector<16x32xf32>
    %c0_15 = arith.constant 0 : index
    %c0_16 = arith.constant 0 : index
    %27 = vector.load %arg11[%c0_15, %c0_16] : memref<16x32xf32, #tpu.memory_space<vmem>>, vector<16x32xf32>
    tpu.vector_store %arg11[%c0_15, %c0_16], %26 {strides = array<i32>} : memref<16x32xf32, #tpu.memory_space<vmem>>, vector<16x32xf32>,
    %c0_i32_17 = arith.constant 0 : i32
    %28 = arith.cmpi eq, %arg1, %c0_i32_17 : i32
    %29 = arith.extui %28 : i1 to i32
    %c0_i32_18 = arith.constant 0 : i32
    %30 = arith.cmpi ne, %29, %c0_i32_18 : i32
    scf.if %30 {
      %c0_19 = arith.constant 0 : index
      %c0_20 = arith.constant 0 : index
      %31 = vector.load %arg11[%c0_19, %c0_20] : memref<16x32xf32, #tpu.memory_space<vmem>>, vector<16x32xf32>
      %c0_21 = arith.constant 0 : index
      %c0_22 = arith.constant 0 : index
      %32 = vector.load %arg9[%c0_21, %c0_22] : memref<16x32xf32, #tpu.memory_space<vmem>>, vector<16x32xf32>
      tpu.vector_store %arg9[%c0_21, %c0_22], %31 {strides = array<i32>} : memref<16x32xf32, #tpu.memory_space<vmem>>, vector<16x32xf32>,
    } else {
    }
    return
  }
  func.func @transform_0(%arg0: i32, %arg1: i32) -> (i32, i32) {
    %c0_i32 = arith.constant 0 : i32
    %c0_i32_0 = arith.constant 0 : i32
    return %arg0, %c0_i32 : i32, i32
  }
  func.func @transform_1(%arg0: i32, %arg1: i32) -> (i32, i32) {
    %c0_i32 = arith.constant 0 : i32
    %c0_i32_0 = arith.constant 0 : i32
    %c0_i32_1 = arith.constant 0 : i32
    return %c0_i32, %c0_i32_0 : i32, i32
  }
  func.func @transform_2(%arg0: i32, %arg1: i32) -> (i32, i32) {
    %c0_i32 = arith.constant 0 : i32
    %c0_i32_0 = arith.constant 0 : i32
    %c0_i32_1 = arith.constant 0 : i32
    return %c0_i32, %c0_i32_0 : i32, i32
  }
  func.func @transform_3(%arg0: i32, %arg1: i32) -> (i32, i32) {
    %c0_i32 = arith.constant 0 : i32
    %c0_i32_0 = arith.constant 0 : i32
    return %c0_i32, %arg1 : i32, i32
  }
  func.func @transform_4(%arg0: i32, %arg1: i32) -> (i32, i32) {
    %c0_i32 = arith.constant 0 : i32
    %c0_i32_0 = arith.constant 0 : i32
    return %c0_i32, %arg1 : i32, i32
  }
  func.func @transform_5(%arg0: i32, %arg1: i32) -> (i32, i32) {
    %c0_i32 = arith.constant 0 : i32
    %c0_i32_0 = arith.constant 0 : i32
    return %arg1, %c0_i32 : i32, i32
  }
  func.func @transform_6(%arg0: i32, %arg1: i32) -> (i32, i32) {
    %c0_i32 = arith.constant 0 : i32
    %c0_i32_0 = arith.constant 0 : i32
    %c0_i32_1 = arith.constant 0 : i32
    return %c0_i32, %c0_i32_0 : i32, i32
  }
  func.func @transform_7(%arg0: i32, %arg1: i32) -> (i32, i32) {
    %c0_i32 = arith.constant 0 : i32
    %c0_i32_0 = arith.constant 0 : i32
    return %arg0, %c0_i32 : i32, i32
  }
}

</mosaic_0001>

<llo_original>
// kernel: simple_res_block.1
$region0: #{simple_res_block.1}
  #allocation0 [shape = 'u32[]', space=smem, size = 0x4, offset = 0x4, fixed_abs, tag = 'smem constant byte address 0x4 - core index']
  #allocation1 [shape = 'u32[144,128]{1,0:T(1,128)}', space=vmem, size = 0x12000, scoped, tag = 'internal scratch']
  #allocation2 [shape = 'bf16[16,32]{1,0:T(16,128)(2,1)}', space=vmem, size = 0x1000, scoped, tag = 'scratch operand']
  #allocation3 [shape = 'f32[16,32]{1,0:T(8,128)}', space=vmem, size = 0x2000, scoped, tag = 'scratch operand']
  %s0 = inlined_call_operand.vmem [shape: f32[16,32], index: 0, kind: input, shape index: {}]
  %s1 = inlined_call_operand.vmem [shape: f32[1,32], index: 1, kind: input, shape index: {}]
  %s2 = inlined_call_operand.vmem [shape: f32[1,32], index: 2, kind: input, shape index: {}]
  %s3 = inlined_call_operand.hbm [shape: bf16[32,32], index: 3, kind: input, shape index: {}]
  %s4 = inlined_call_operand.hbm [shape: f32[1,32], index: 4, kind: input, shape index: {}]
  %s5 = inlined_call_operand.vmem [shape: bf16[32,32], index: 5, kind: input, shape index: {}]
  %s6 = inlined_call_operand.vmem [shape: f32[1,32], index: 6, kind: input, shape index: {}]
  %s7 = inlined_call_operand.hbm [shape: f32[16,32], index: 7, kind: output, shape index: {}]
  %s8 = sld [smem:[#allocation0]]
  $region54: #{simple_res_block.1} parent=0
    _
  %s10 = ssub.s32 1, %s8
  %s11 = scalar_select 0, %s10, %s8
  $region1: #{simple_res_block.1} parent=0
    #allocation4 [shape = 'u8[8192]{0}', space=vmem, size = 0x2000, scoped, tag = 'input window, operand 3, single buffered']
    #allocation5 [shape = 's32[1]{0}', space=sflag, size = 0x4, scoped, tag = 'scoped memory for simple_res_block.1']
    #allocation6 [shape = 's32[1]{0}', space=sflag, size = 0x4, scoped, tag = 'scoped memory for simple_res_block.1']
    #allocation7 [shape = 'u8[512]{0}', space=vmem, size = 0x400, scoped, tag = 'input window, operand 4, single buffered']
    #allocation8 [shape = 's32[1]{0}', space=sflag, size = 0x4, scoped, tag = 'scoped memory for simple_res_block.1']
    #allocation9 [shape = 'u8[8192]{0}', space=vmem, size = 0x2000, scoped, tag = 'output window, operand 0, single buffered']
    %12 = vsyncpa [#allocation5], 0
    %13 = vsyncpa [#allocation8], 0
    %14 = vsyncpa [#allocation6], 0
    // Predicated region
    $region2: #{simple_res_block.1} parent=1 // pred_check
      _
    $region3: #{simple_res_block.1} parent=1 // pred_check_branch
      %16 = sbr.rel (0) target = $region5
    $region4: #{simple_res_block.1} parent=1 // pred_region
      _
    $region5: #{simple_res_block.1} parent=1 // pred_fallthru
      _
    // Predicated region
    $region6: #{simple_res_block.1} parent=1 // pred_check
      _
    $region7: #{simple_res_block.1} parent=1 // pred_check_branch
      %18 = sbr.rel (0) target = $region9
    $region8: #{simple_res_block.1} parent=1 // pred_region
      _
    $region9: #{simple_res_block.1} parent=1 // pred_fallthru
      _
    // Predicated region
    $region10: #{simple_res_block.1} parent=1 // pred_check
      _
    $region11: #{simple_res_block.1} parent=1 // pred_check_branch
      %20 = sbr.rel (0) target = $region13
    $region12: #{simple_res_block.1} parent=1 // pred_region
      _
    $region13: #{simple_res_block.1} parent=1 // pred_fallthru
      _
    // Predicated region
    $region14: #{simple_res_block.1} parent=1 // pred_check
      _
    $region15: #{simple_res_block.1} parent=1 // pred_check_branch
      %22 = sbr.rel (0) target = $region17
    $region16: #{simple_res_block.1} parent=1 // pred_region
      %s24 = ssub.s32 256, 256
      %25 = vsyncadd [#allocation5], %s24
      %s26 = sshll.u32 [#allocation4], 4
      %s27 = int_to_ptr.vmem [resolvable:$true] %s26
      %32 = dma.hbm_to_vmem [thread:$0]  %s3, 256, %s27, [#allocation5], 64, 64, 4
    $region17: #{simple_res_block.1} parent=1 // pred_fallthru
      _
    // Predicated region
    $region18: #{simple_res_block.1} parent=1 // pred_check
      _
    $region19: #{simple_res_block.1} parent=1 // pred_check_branch
      %34 = sbr.rel (0) target = $region21
    $region20: #{simple_res_block.1} parent=1 // pred_region
      %s36 = ssub.s32 16, 16
      %37 = vsyncadd [#allocation8], %s36
      %s39 = sshll.u32 [#allocation7], 4
      %s40 = int_to_ptr.vmem [resolvable:$true] %s39
      %42 = dma.hbm_to_vmem [thread:$0]  %s4, 16, %s40, [#allocation8]
    $region21: #{simple_res_block.1} parent=1 // pred_fallthru
      _
    // Predicated region
    $region22: #{simple_res_block.1} parent=1 // pred_check
      _
    $region23: #{simple_res_block.1} parent=1 // pred_check_branch
      %44 = sbr.rel (0) target = $region25
    $region24: #{simple_res_block.1} parent=1 // pred_region
      _
    $region25: #{simple_res_block.1} parent=1 // pred_fallthru
      _
    // Predicated region
    $region26: #{simple_res_block.1} parent=1 // pred_check
      _
    $region27: #{simple_res_block.1} parent=1 // pred_check_branch
      %46 = sbr.rel (0) target = $region29
    $region28: #{simple_res_block.1} parent=1 // pred_region
      _
    $region29: #{simple_res_block.1} parent=1 // pred_fallthru
      _
    // Predicated region
    $region30: #{simple_res_block.1} parent=1 // pred_check
      _
    $region31: #{simple_res_block.1} parent=1 // pred_check_branch
      %48 = sbr.rel (0) target = $region33
    $region32: #{simple_res_block.1} parent=1 // pred_region
      %49 = dma.done [#allocation5], 256
    $region33: #{simple_res_block.1} parent=1 // pred_fallthru
      _
    // Predicated region
    $region34: #{simple_res_block.1} parent=1 // pred_check
      _
    $region35: #{simple_res_block.1} parent=1 // pred_check_branch
      %51 = sbr.rel (0) target = $region37
    $region36: #{simple_res_block.1} parent=1 // pred_region
      %52 = dma.done [#allocation8], 16
    $region37: #{simple_res_block.1} parent=1 // pred_fallthru
      _
    %p54 = scmp.eq.s32.totalorder 0, 0
    // Predicated region
    $region38: #{simple_res_block.1} parent=1 // pred_check
      %p55 = pneg %p54
    $region39: #{simple_res_block.1} parent=1 // pred_check_branch
      %57 = sbr.rel (%p55) target = $region41
    $region40: #{simple_res_block.1} parent=1 // pred_region
      %v58 = vld [vmem:[%s0] sm:$0xff]
      %v59 = vld [vmem:[%s0 + $0x8] sm:$0xff]
      %vm60 = vcmask 261120
      %v61 = vsel %vm60, %v58, 0.0
      %62 = vadd.xlane.f32.xlu0 %v61
      %v63 = vpop.xlane.xlu0 %62
      %v64 = vsel %vm60, %v59, 0.0
      %65 = vadd.xlane.f32.xlu0 %v64
      %v66 = vpop.xlane.xlu0 %65
      %v67 = vrcp.pop 32.0
      %v68 = vmul.f32 %v63, %v67
      %v69 = vmul.f32 %v66, %v67
      %v70 = vsub.f32 %v58, %v68
      %v71 = vsub.f32 %v59, %v69
      %v72 = vmul.f32 %v70, %v70
      %v73 = vmul.f32 %v71, %v71
      %v74 = vsel %vm60, %v72, 0.0
      %75 = vadd.xlane.f32.xlu0 %v74
      %v76 = vpop.xlane.xlu0 %75
      %v77 = vsel %vm60, %v73, 0.0
      %78 = vadd.xlane.f32.xlu0 %v77
      %v79 = vpop.xlane.xlu0 %78
      %v80 = vmul.f32 %v76, %v67
      %v81 = vmul.f32 %v79, %v67
      %v82 = vadd.f32 %v80, 1e-05
      %v83 = vadd.f32 %v81, 1e-05
      %v84 = vrsqrt.pop %v82
      %v85 = vrsqrt.pop %v83
      %v86 = vmul.f32 %v70, %v84
      %v87 = vmul.f32 %v71, %v85
      %v88 = vld [vmem:[%s1] sm:$0x1]
      %v90 = vlaneseq
      %v91 = vshrl.u32 %v90, 7
      %v92 = vsub.s32 0, %v91
      %v93 = vrot.slane %v88, %v92
      %v95 = vmul.f32 %v86, %v93
      %v96 = vmul.f32 %v87, %v93
      %v97 = vld [vmem:[%s2] sm:$0x1]
      %v99 = vlaneseq
      %v100 = vshrl.u32 %v99, 7
      %v101 = vsub.s32 0, %v100
      %v102 = vrot.slane %v97, %v101
      %v104 = vadd.f32 %v95, %v102
      %v105 = vadd.f32 %v96, %v102
      %v106 = vld [vmem:[%s6] sm:$0x1]
      %v108 = vlaneseq
      %v109 = vshrl.u32 %v108, 7
      %v110 = vsub.s32 0, %v109
      %v111 = vrot.slane %v106, %v110
      %v113 = vadd.f32 %v104, %v111
      %v114 = vadd.f32 %v105, %v111
      %115 = vst.msk [vmem:[#allocation3] sm:$0xff] %vm60, %v113
      %116 = vst.msk [vmem:[#allocation3 + $0x8] sm:$0xff] %vm60, %v114
      %v117 = vpack.c.bf16 %v105, %v104
      %118 = vst.msk [vmem:[#allocation2] sm:$0xff] %vm60, %v117
    $region41: #{simple_res_block.1} parent=1 // pred_fallthru
      _
    %v119 = vld [vmem:[#allocation2] sm:$0xff]
    %v120 = vld [vmem:[#allocation4] sm:$0xf]
    %v121 = vld [vmem:[#allocation4 + $0x4] sm:$0xf]
    %v122 = vld [vmem:[#allocation4 + $0x8] sm:$0xf]
    %v123 = vld [vmem:[#allocation4 + $0xc] sm:$0xf]
    %v124 = vld [vmem:[#allocation7] sm:$0x1]
    %v126 = vlaneseq
    %v127 = vshrl.u32 %v126, 7
    %v128 = vsub.s32 0, %v127
    %v129 = vrot.slane %v124, %v128
    %v135 = vunpack.c.l.b16 %v120
    %v136 = vunpack.c.l.b16 %v121
    %v137 = vunpack.c.l.b16 %v122
    %v138 = vunpack.c.l.b16 %v123
    %v139 = vpack.c.b16 %v136, %v135
    %v140 = vpack.c.b16 %v138, %v137
    %vm143 = vcmask 261120
    %v145 = vsel %vm143, %v119, 0
    %147 = vmatprep.subr.bf16.mxu0 0
    %148 = vmatpush1.bf16.msra.mxu0 %v139
    %149 = vmatprep.subr.bf16.mxu0 0
    %150 = vmatpush1.bf16.msra.mxu0 %v140
    %151 = vmatprep.subr.bf16.mxu0 0
    %152 = vmatpush1.bf16.msra.mxu0 0
    %153 = vmatprep.subr.bf16.mxu0 0
    %154 = vmatpush1.bf16.msra.mxu0 0
    %155 = vmatprep.subr.bf16.mxu0 0
    %156 = vmatpush1.bf16.msra.mxu0 0
    %157 = vmatprep.subr.bf16.mxu0 0
    %158 = vmatpush1.bf16.msra.mxu0 0
    %159 = vmatprep.subr.bf16.mxu0 0
    %160 = vmatpush1.bf16.msra.mxu0 0
    %161 = vmatprep.subr.bf16.mxu0 0
    %162 = vmatpush1.bf16.msra.mxu0 0
    %163 = vmatprep.subr.bf16.mxu0 0
    %164 = vmatpush1.bf16.msra.mxu0 0
    %165 = vmatprep.subr.bf16.mxu0 0
    %166 = vmatpush1.bf16.msra.mxu0 0
    %167 = vmatprep.subr.bf16.mxu0 0
    %168 = vmatpush1.bf16.msra.mxu0 0
    %169 = vmatprep.subr.bf16.mxu0 0
    %170 = vmatpush1.bf16.msra.mxu0 0
    %171 = vmatprep.subr.bf16.mxu0 0
    %172 = vmatpush1.bf16.msra.mxu0 0
    %173 = vmatprep.subr.bf16.mxu0 0
    %174 = vmatpush1.bf16.msra.mxu0 0
    %175 = vmatprep.subr.bf16.mxu0 0
    %176 = vmatpush1.bf16.msra.mxu0 0
    %177 = vmatprep.subr.bf16.mxu0 0
    %178 = vmatpush1.bf16.msra.mxu0 0
    %179 = vmatprep.mubr.bf16.mxu0 0
    %180 = vmatmul.mubr.bf16.gmra.mrb[0].mxu0 %v145
    %v181 = vpop.f32.mrb[0].mxu0
    %v182 = vadd.f32 %v129, %v181
    %v183 = vpop.f32.mrb[0].mxu0
    %v184 = vpop.f32.mrb[0].mxu0
    %v185 = vadd.f32 %v129, %v184
    %v186 = vpop.f32.mrb[0].mxu0
    %187 = vdwg.mxu0
    %v188 = vmul.f32 %v182, 0.5
    %v189 = vmul.f32 %v185, 0.5
    %v190 = vmul.f32 %v182, %v182
    %v191 = vmul.f32 %v185, %v185
    %v192 = vmul.f32 %v190, %v182
    %v193 = vmul.f32 %v191, %v185
    %v194 = vmul.f32 %v192, 0.044715
    %v195 = vmul.f32 %v193, 0.044715
    %v196 = vadd.f32 %v182, %v194
    %v197 = vadd.f32 %v185, %v195
    %v198 = vmul.f32 %v196, 0.7978846
    %v199 = vmul.f32 %v197, 0.7978846
    %v200 = vtanh.pop %v198
    %v201 = vtanh.pop %v199
    %v202 = vadd.f32 %v200, 1.0
    %v203 = vadd.f32 %v201, 1.0
    %v204 = vmul.f32 %v188, %v202
    %v205 = vmul.f32 %v189, %v203
    %v206 = vld [vmem:[#allocation3] sm:$0xff]
    %v207 = vld [vmem:[#allocation3 + $0x8] sm:$0xff]
    %v208 = vpack.c.bf16 %v205, %v204
    %v209 = vld [vmem:[%s5] sm:$0xf]
    %v210 = vld [vmem:[%s5 + $0x4] sm:$0xf]
    %v211 = vld [vmem:[%s5 + $0x8] sm:$0xf]
    %v212 = vld [vmem:[%s5 + $0xc] sm:$0xf]
    %v217 = vunpack.c.l.b16 %v209
    %v218 = vunpack.c.l.b16 %v210
    %v219 = vunpack.c.l.b16 %v211
    %v220 = vunpack.c.l.b16 %v212
    %v221 = vpack.c.b16 %v218, %v217
    %v222 = vpack.c.b16 %v220, %v219
    %v226 = vsel %vm143, %v208, 0
    %228 = vmatprep.subr.bf16.mxu0 0
    %229 = vmatpush1.bf16.msra.mxu0 %v221
    %230 = vmatprep.subr.bf16.mxu0 0
    %231 = vmatpush1.bf16.msra.mxu0 %v222
    %232 = vmatprep.subr.bf16.mxu0 0
    %233 = vmatpush1.bf16.msra.mxu0 0
    %234 = vmatprep.subr.bf16.mxu0 0
    %235 = vmatpush1.bf16.msra.mxu0 0
    %236 = vmatprep.subr.bf16.mxu0 0
    %237 = vmatpush1.bf16.msra.mxu0 0
    %238 = vmatprep.subr.bf16.mxu0 0
    %239 = vmatpush1.bf16.msra.mxu0 0
    %240 = vmatprep.subr.bf16.mxu0 0
    %241 = vmatpush1.bf16.msra.mxu0 0
    %242 = vmatprep.subr.bf16.mxu0 0
    %243 = vmatpush1.bf16.msra.mxu0 0
    %244 = vmatprep.subr.bf16.mxu0 0
    %245 = vmatpush1.bf16.msra.mxu0 0
    %246 = vmatprep.subr.bf16.mxu0 0
    %247 = vmatpush1.bf16.msra.mxu0 0
    %248 = vmatprep.subr.bf16.mxu0 0
    %249 = vmatpush1.bf16.msra.mxu0 0
    %250 = vmatprep.subr.bf16.mxu0 0
    %251 = vmatpush1.bf16.msra.mxu0 0
    %252 = vmatprep.subr.bf16.mxu0 0
    %253 = vmatpush1.bf16.msra.mxu0 0
    %254 = vmatprep.subr.bf16.mxu0 0
    %255 = vmatpush1.bf16.msra.mxu0 0
    %256 = vmatprep.subr.bf16.mxu0 0
    %257 = vmatpush1.bf16.msra.mxu0 0
    %258 = vmatprep.subr.bf16.mxu0 0
    %259 = vmatpush1.bf16.msra.mxu0 0
    %260 = vmatprep.mubr.bf16.mxu0 0
    %261 = vmatmul.mubr.bf16.gmra.mrb[0].mxu0 %v226
    %v262 = vpop.f32.mrb[0].mxu0
    %v263 = vadd.f32 0.0, %v262
    %v264 = vpop.f32.mrb[0].mxu0
    %v265 = vpop.f32.mrb[0].mxu0
    %v266 = vadd.f32 0.0, %v265
    %v267 = vpop.f32.mrb[0].mxu0
    %268 = vdwg.mxu0
    %v269 = vadd.f32 %v206, %v263
    %v270 = vadd.f32 %v207, %v266
    %271 = vst.msk [vmem:[#allocation3] sm:$0xff] %vm143, %v269
    %272 = vst.msk [vmem:[#allocation3 + $0x8] sm:$0xff] %vm143, %v270
    // Predicated region
    $region42: #{simple_res_block.1} parent=1 // pred_check
      %p273 = pneg %p54
    $region43: #{simple_res_block.1} parent=1 // pred_check_branch
      %275 = sbr.rel (%p273) target = $region45
    $region44: #{simple_res_block.1} parent=1 // pred_region
      %v276 = vld [vmem:[#allocation3] sm:$0xff]
      %v277 = vld [vmem:[#allocation3 + $0x8] sm:$0xff]
      %278 = vst.msk [vmem:[#allocation9] sm:$0xff] %vm143, %v276
      %279 = vst.msk [vmem:[#allocation9 + $0x8] sm:$0xff] %vm143, %v277
    $region45: #{simple_res_block.1} parent=1 // pred_fallthru
      _
    // Predicated region
    $region46: #{simple_res_block.1} parent=1 // pred_check
      _
    $region47: #{simple_res_block.1} parent=1 // pred_check_branch
      %281 = sbr.rel (0) target = $region49
    $region48: #{simple_res_block.1} parent=1 // pred_region
      %s283 = ssub.s32 256, 256
      %284 = vsyncadd [#allocation6], %s283
      %s285 = sshll.u32 [#allocation9], 4
      %s286 = int_to_ptr.vmem [resolvable:$true] %s285
      %291 = dma.vmem_to_hbm [thread:$0]  %s286, 256, %s7, [#allocation6], 128, 128, 8
    $region49: #{simple_res_block.1} parent=1 // pred_fallthru
      _
    // Predicated region
    $region50: #{simple_res_block.1} parent=1 // pred_check
      _
    $region51: #{simple_res_block.1} parent=1 // pred_check_branch
      %293 = sbr.rel (0) target = $region53
    $region52: #{simple_res_block.1} parent=1 // pred_region
      %294 = dma.done [#allocation6], 256
    $region53: #{simple_res_block.1} parent=1 // pred_fallthru
      _
    %295 = vsyncpa [#allocation5], 1
    %296 = vsyncpa [#allocation8], 1
    %297 = vsyncpa [#allocation6], 1

</llo_original>
